<compile_context>
chip_gen: v6e
topology: v6e:2x2x1
jax: 0.10.0
libtpu: 0.0.40
codegen_flags: <defaults>
</compile_context>

<pallas_src>
import jax
import jax.numpy as jnp
from jax.experimental import pallas as pl
from jax.experimental.pallas import tpu as pltpu


def _round_up(x, m):
    return (x + m - 1) // m * m


def _pick_tile(dim, candidates=(512, 256, 128)):
    for t in candidates:
        if dim % t == 0:
            return t
    return dim  # full dim (BlockSpec allows a block equal to the full array dim)


def _tpu_vmem_capacity():
    try:
        return int(pltpu.get_tpu_info().vmem_capacity_bytes)
    except Exception:
        return None


def _linear_lora_kernel(x_ref, wt_ref, b_ref, a_ref, bm_ref, o_ref,
                        acc_ref, xa_ref):
    j = pl.program_id(1)        # out_dim tile index
    k = pl.program_id(2)        # in_dim (reduction) tile index
    nk = pl.num_programs(2)

    @pl.when(k == 0)
    def _():
        acc_ref[...] = jnp.zeros_like(acc_ref)

    # x @ A is only accumulated on the first N tile of a row tile; the scratch
    # persists across grid steps and is reused for every other N tile.
    @pl.when((j == 0) & (k == 0))
    def _():
        xa_ref[...] = jnp.zeros_like(xa_ref)

    x = x_ref[...]                                               # (tm, tk) bf16
    acc_ref[...] += jnp.dot(x, wt_ref[...],
                            preferred_element_type=jnp.float32)  # MXU, f32 acc

    @pl.when(j == 0)
    def _():
        xa_ref[...] += jnp.dot(x, a_ref[...],
                               preferred_element_type=jnp.float32)  # (tm, rank)

    @pl.when(k == nk - 1)
    def _():
        # Both LoRA operands in bf16 on the MXU (B already carries alpha);
        # accumulation stays f32 via preferred_element_type.
        lora = jnp.dot(xa_ref[...].astype(bm_ref.dtype), bm_ref[...],
                       preferred_element_type=jnp.float32)          # (tm, tn)
        o_ref[...] = (acc_ref[...] + b_ref[...].astype(jnp.float32) + lora
                      ).astype(o_ref.dtype)


def linear_with_lora(x, wt, b, A, B, alpha, *, tm=None):
    """Fused LinearWithLoRA forward.

    x : [..., in_dim]      activations (bf16)
    wt: [in_dim, out_dim]  pre-transposed torch Linear weight (W^T)
    b : [out_dim]          bias
    A : [in_dim, rank]     LoRA A
    B : [rank, out_dim]    LoRA B
    Returns [..., out_dim].
    """
    in_dim, out_dim = wt.shape
    rank = A.shape[1]
    assert x.shape[-1] == in_dim and A.shape[0] == in_dim
    assert B.shape == (rank, out_dim) and b.shape == (out_dim,)

    lead_shape = x.shape[:-1]
    M = 1
    for s in lead_shape:
        M *= s
    x2 = x.reshape(M, in_dim)

    vmem_cap = _tpu_vmem_capacity()

    # Row tile: generation aware.  128-MiB-VMEM chips (v5e/v6e) take 1024 so
    # the weight stream is compute-bound on v6e; v7x (64 MiB) keeps 512 where
    # it is already compute-bound.  Clamped (sublane-aligned) for small M.
    if tm is None:
        tm = 1024 if (vmem_cap is not None and vmem_cap >= 100 * 1024 * 1024) else 512
    tm = min(tm, _round_up(M, 16))
    M_pad = _round_up(M, tm)
    if M_pad != M:
        x2 = jnp.pad(x2, ((0, M_pad - M), (0, 0)))       # ragged M: zero-pad rows

    # Pad out_dim to a 128 multiple: lane-dense (unmasked) output stores and
    # 128-aligned W^T / B / bias slabs.
    N_pad = _round_up(out_dim, 128)
    if N_pad != out_dim:
        wt = jnp.pad(wt, ((0, 0), (0, N_pad - out_dim)))
        b = jnp.pad(b, (0, N_pad - out_dim))
        B = jnp.pad(B, ((0, 0), (0, N_pad - out_dim)))

    tn = _pick_tile(N_pad)       # 512 / 256 / 128
    tk = _pick_tile(in_dim)      # 512 / 256 / 128, or full in_dim for small K

    # Fold alpha into B once, outside the kernel (no per-step VPU multiply,
    # no recompile per alpha, safe for traced alpha).
    bm = (jnp.asarray(alpha, jnp.float32) * B.astype(jnp.float32)).astype(B.dtype)
    b2 = b.reshape(1, N_pad)

    vmem_limit = (48 * 1024 * 1024 if vmem_cap is None
                  else min((vmem_cap * 3) // 4, 96 * 1024 * 1024))

    out = pl.pallas_call(
        _linear_lora_kernel,
        out_shape=jax.ShapeDtypeStruct((M_pad, N_pad), x.dtype),
        grid_spec=pltpu.PrefetchScalarGridSpec(
            num_scalar_prefetch=0,
            grid=(M_pad // tm, N_pad // tn, in_dim // tk),
            in_specs=[
                pl.BlockSpec((tm, tk), lambda i, j, k: (i, k)),     # x tile
                pl.BlockSpec((tk, tn), lambda i, j, k: (k, j)),     # W^T slab
                pl.BlockSpec((1, tn), lambda i, j, k: (0, j)),      # bias slab
                pl.BlockSpec((tk, rank), lambda i, j, k: (k, 0)),   # LoRA A slab
                pl.BlockSpec((rank, tn), lambda i, j, k: (0, j)),   # alpha*B slab
            ],
            out_specs=pl.BlockSpec((tm, tn), lambda i, j, k: (i, j)),
            scratch_shapes=[
                pltpu.VMEM((tm, tn), jnp.float32),    # base accumulator
                pltpu.VMEM((tm, rank), jnp.float32),  # hoisted x @ A accumulator
            ],
        ),
        compiler_params=pltpu.CompilerParams(
            # K is a reduction and the hoisted x@A scratch creates a
            # j==0 -> j>0 dependency, so N and K are "arbitrary"; M stays
            # "parallel" for megacore sharding.
            dimension_semantics=("parallel", "arbitrary", "arbitrary"),
            vmem_limit_bytes=vmem_limit,
        ),
    )(x2, wt, b2, A, bm)

    out = out[:M, :out_dim]
    return out.reshape(*lead_shape, out_dim)


if __name__ == "__main__":
    key = jax.random.PRNGKey(0)

    def make_case(k, batch, seq, in_dim, out_dim, rank):
        k_x, k_w, k_b, k_a, k_bm = jax.random.split(k, 5)
        x = jax.random.normal(k_x, (batch, seq, in_dim), jnp.float32).astype(jnp.bfloat16)
        w = (jax.random.normal(k_w, (out_dim, in_dim), jnp.float32) * 0.1).astype(jnp.bfloat16)
        b = (jax.random.normal(k_b, (out_dim,), jnp.float32) * 0.1).astype(jnp.bfloat16)
        std = 1.0 / (rank ** 0.5)
        A = (jax.random.normal(k_a, (in_dim, rank), jnp.float32) * std).astype(jnp.bfloat16)
        B0 = jnp.zeros((rank, out_dim), jnp.bfloat16)   # module-faithful init: B = 0
        B1 = (jax.random.normal(k_bm, (rank, out_dim), jnp.float32) * 0.05).astype(jnp.bfloat16)
        return x, w, b, A, (B0, B1)

    def ref(x, w, b, A, B, alpha):
        xf = x.astype(jnp.float32)
        return (xf @ w.astype(jnp.float32).T + b.astype(jnp.float32)
                + alpha * (xf @ A.astype(jnp.float32) @ B.astype(jnp.float32)))

    alpha = 16.0
    cases = [
        (2, 8, 32, 32, 8),       # small: single-tile grid
        (2, 24, 384, 300, 8),    # multi K / N tiles + non-128 out_dim padding
    ]
    for (batch, seq, in_dim, out_dim, rank) in cases:
        key, sub = jax.random.split(key)
        x, w, b, A, Bs = make_case(sub, batch, seq, in_dim, out_dim, rank)
        wt = jnp.asarray(w.T)    # torch-layout weight transposed ONCE, outside hot path
        for B in Bs:             # B=0 (module init) and nonzero B (exercises LoRA path)
            y = linear_with_lora(x, wt, b, A, B, alpha)
            jax.block_until_ready(y)
            assert y.shape == (batch, seq, out_dim) and y.dtype == jnp.bfloat16
            r = ref(x, w, b, A, B, alpha)
            assert jnp.allclose(y.astype(jnp.float32), r, atol=8e-2, rtol=8e-2), \
                float(jnp.max(jnp.abs(y.astype(jnp.float32) - r)))

    print("KERNEL_OK")
</pallas_src>

<mosaic_0001>
module attributes {stable_mosaic.version = 11 : i64} {
  func.func @_linear_lora_kernel(%arg0: i32, %arg1: i32, %arg2: i32, %arg3: memref<16x32xbf16, #tpu.memory_space<vmem>>, %arg4: memref<32x128xbf16, #tpu.memory_space<vmem>>, %arg5: memref<1x128xbf16, #tpu.memory_space<vmem>>, %arg6: memref<32x8xbf16, #tpu.memory_space<vmem>>, %arg7: memref<8x128xbf16, #tpu.memory_space<vmem>>, %arg8: memref<16x128xbf16, #tpu.memory_space<vmem>>, %arg9: memref<16x128xf32, #tpu.memory_space<vmem>>, %arg10: memref<16x8xf32, #tpu.memory_space<vmem>>) attributes {dimension_semantics = [#tpu.dimension_semantics<parallel>, #tpu.dimension_semantics<arbitrary>, #tpu.dimension_semantics<arbitrary>], iteration_bounds = array<i64: 1, 1, 1>, scalar_prefetch = 0 : i64, scratch_operands = 2 : i64, tpu.core_type = #tpu.core_type<tc>, window_params = [{transform_indices = @transform_0, window_bounds = array<i64: 16, 32>}, {transform_indices = @transform_1, window_bounds = array<i64: 32, 128>}, {transform_indices = @transform_2, window_bounds = array<i64: 1, 128>}, {transform_indices = @transform_3, window_bounds = array<i64: 32, 8>}, {transform_indices = @transform_4, window_bounds = array<i64: 8, 128>}, {transform_indices = @transform_5, window_bounds = array<i64: 16, 128>}]} {
    %c0_i32 = arith.constant 0 : i32
    %0 = arith.cmpi eq, %arg2, %c0_i32 : i32
    %1 = arith.extui %0 : i1 to i32
    %c0_i32_0 = arith.constant 0 : i32
    %2 = arith.cmpi ne, %1, %c0_i32_0 : i32
    scf.if %2 {
      %cst_15 = arith.constant 0.000000e+00 : f32
      %20 = vector.broadcast %cst_15 : f32 to vector<16x128xf32>
      %c0_16 = arith.constant 0 : index
      %c0_17 = arith.constant 0 : index
      %21 = vector.load %arg9[%c0_16, %c0_17] : memref<16x128xf32, #tpu.memory_space<vmem>>, vector<16x128xf32>
      tpu.vector_store %arg9[%c0_16, %c0_17], %20 {strides = array<i32>} : memref<16x128xf32, #tpu.memory_space<vmem>>, vector<16x128xf32>,
    } else {
    }
    %c0_i32_1 = arith.constant 0 : i32
    %3 = arith.cmpi eq, %arg1, %c0_i32_1 : i32
    %c0_i32_2 = arith.constant 0 : i32
    %4 = arith.cmpi eq, %arg2, %c0_i32_2 : i32
    %5 = arith.andi %3, %4 : i1
    %6 = arith.extui %5 : i1 to i32
    %c0_i32_3 = arith.constant 0 : i32
    %7 = arith.cmpi ne, %6, %c0_i32_3 : i32
    scf.if %7 {
      %cst_15 = arith.constant 0.000000e+00 : f32
      %20 = vector.broadcast %cst_15 : f32 to vector<16x8xf32>
      %c0_16 = arith.constant 0 : index
      %c0_17 = arith.constant 0 : index
      %21 = vector.load %arg10[%c0_16, %c0_17] : memref<16x8xf32, #tpu.memory_space<vmem>>, vector<16x8xf32>
      tpu.vector_store %arg10[%c0_16, %c0_17], %20 {strides = array<i32>} : memref<16x8xf32, #tpu.memory_space<vmem>>, vector<16x8xf32>,
    } else {
    }
    %c0 = arith.constant 0 : index
    %c0_4 = arith.constant 0 : index
    %8 = vector.load %arg3[%c0, %c0_4] : memref<16x32xbf16, #tpu.memory_space<vmem>>, vector<16x32xbf16>
    %c0_5 = arith.constant 0 : index
    %c0_6 = arith.constant 0 : index
    %9 = vector.load %arg9[%c0_5, %c0_6] : memref<16x128xf32, #tpu.memory_space<vmem>>, vector<16x128xf32>
    %c0_7 = arith.constant 0 : index
    %c0_8 = arith.constant 0 : index
    %10 = vector.load %arg4[%c0_7, %c0_8] : memref<32x128xbf16, #tpu.memory_space<vmem>>, vector<32x128xbf16>
    %cst = arith.constant dense<0.000000e+00> : vector<16x128xf32>
    %11 = tpu.matmul %8, %10, %cst {dimension_numbers = #tpu.dot_dimension_numbers<[1], [0], [0], [1], [0, 0, 1, 1], [], []>} : vector<16x32xbf16>, vector<32x128xbf16>, vector<16x128xf32> -> vector<16x128xf32>
    %12 = arith.addf %9, %11 : vector<16x128xf32>
    %c0_9 = arith.constant 0 : index
    %c0_10 = arith.constant 0 : index
    %13 = vector.load %arg9[%c0_9, %c0_10] : memref<16x128xf32, #tpu.memory_space<vmem>>, vector<16x128xf32>
    tpu.vector_store %arg9[%c0_9, %c0_10], %12 {strides = array<i32>} : memref<16x128xf32, #tpu.memory_space<vmem>>, vector<16x128xf32>,
    %c0_i32_11 = arith.constant 0 : i32
    %14 = arith.cmpi eq, %arg1, %c0_i32_11 : i32
    %15 = arith.extui %14 : i1 to i32
    %c0_i32_12 = arith.constant 0 : i32
    %16 = arith.cmpi ne, %15, %c0_i32_12 : i32
    scf.if %16 {
      %c0_15 = arith.constant 0 : index
      %c0_16 = arith.constant 0 : index
      %20 = vector.load %arg10[%c0_15, %c0_16] : memref<16x8xf32, #tpu.memory_space<vmem>>, vector<16x8xf32>
      %c0_17 = arith.constant 0 : index
      %c0_18 = arith.constant 0 : index
      %21 = vector.load %arg6[%c0_17, %c0_18] : memref<32x8xbf16, #tpu.memory_space<vmem>>, vector<32x8xbf16>
      %cst_19 = arith.constant dense<0.000000e+00> : vector<16x8xf32>
      %22 = tpu.matmul %8, %21, %cst_19 {dimension_numbers = #tpu.dot_dimension_numbers<[1], [0], [0], [1], [0, 0, 1, 1], [], []>} : vector<16x32xbf16>, vector<32x8xbf16>, vector<16x8xf32> -> vector<16x8xf32>
      %23 = arith.addf %20, %22 : vector<16x8xf32>
      %c0_20 = arith.constant 0 : index
      %c0_21 = arith.constant 0 : index
      %24 = vector.load %arg10[%c0_20, %c0_21] : memref<16x8xf32, #tpu.memory_space<vmem>>, vector<16x8xf32>
      tpu.vector_store %arg10[%c0_20, %c0_21], %23 {strides = array<i32>} : memref<16x8xf32, #tpu.memory_space<vmem>>, vector<16x8xf32>,
    } else {
    }
    %c0_i32_13 = arith.constant 0 : i32
    %17 = arith.cmpi eq, %arg2, %c0_i32_13 : i32
    %18 = arith.extui %17 : i1 to i32
    %c0_i32_14 = arith.constant 0 : i32
    %19 = arith.cmpi ne, %18, %c0_i32_14 : i32
    scf.if %19 {
      %c0_15 = arith.constant 0 : index
      %c0_16 = arith.constant 0 : index
      %20 = vector.load %arg10[%c0_15, %c0_16] : memref<16x8xf32, #tpu.memory_space<vmem>>, vector<16x8xf32>
      %21 = arith.truncf %20 : vector<16x8xf32> to vector<16x8xbf16>
      %c0_17 = arith.constant 0 : index
      %c0_18 = arith.constant 0 : index
      %22 = vector.load %arg7[%c0_17, %c0_18] : memref<8x128xbf16, #tpu.memory_space<vmem>>, vector<8x128xbf16>
      %cst_19 = arith.constant dense<0.000000e+00> : vector<16x128xf32>
      %23 = tpu.matmul %21, %22, %cst_19 {dimension_numbers = #tpu.dot_dimension_numbers<[1], [0], [0], [1], [0, 0, 1, 1], [], []>} : vector<16x8xbf16>, vector<8x128xbf16>, vector<16x128xf32> -> vector<16x128xf32>
      %c0_20 = arith.constant 0 : index
      %c0_21 = arith.constant 0 : index
      %24 = vector.load %arg9[%c0_20, %c0_21] : memref<16x128xf32, #tpu.memory_space<vmem>>, vector<16x128xf32>
      %c0_22 = arith.constant 0 : index
      %c0_23 = arith.constant 0 : index
      %25 = vector.load %arg5[%c0_22, %c0_23] : memref<1x128xbf16, #tpu.memory_space<vmem>>, vector<1x128xbf16>
      %26 = arith.extf %25 : vector<1x128xbf16> to vector<1x128xf32>
      %27 = vector.broadcast %26 : vector<1x128xf32> to vector<16x128xf32>
      %28 = arith.addf %24, %27 : vector<16x128xf32>
      %29 = arith.addf %28, %23 : vector<16x128xf32>
      %30 = arith.truncf %29 : vector<16x128xf32> to vector<16x128xbf16>
      %c0_24 = arith.constant 0 : index
      %c0_25 = arith.constant 0 : index
      %31 = vector.load %arg8[%c0_24, %c0_25] : memref<16x128xbf16, #tpu.memory_space<vmem>>, vector<16x128xbf16>
      tpu.vector_store %arg8[%c0_24, %c0_25], %30 {strides = array<i32>} : memref<16x128xbf16, #tpu.memory_space<vmem>>, vector<16x128xbf16>,
    } else {
    }
    return
  }
  func.func @transform_0(%arg0: i32, %arg1: i32, %arg2: i32) -> (i32, i32) {
    %c0_i32 = arith.constant 0 : i32
    return %arg0, %arg2 : i32, i32
  }
  func.func @transform_1(%arg0: i32, %arg1: i32, %arg2: i32) -> (i32, i32) {
    %c0_i32 = arith.constant 0 : i32
    return %arg2, %arg1 : i32, i32
  }
  func.func @transform_2(%arg0: i32, %arg1: i32, %arg2: i32) -> (i32, i32) {
    %c0_i32 = arith.constant 0 : i32
    %c0_i32_0 = arith.constant 0 : i32
    return %c0_i32, %arg1 : i32, i32
  }
  func.func @transform_3(%arg0: i32, %arg1: i32, %arg2: i32) -> (i32, i32) {
    %c0_i32 = arith.constant 0 : i32
    %c0_i32_0 = arith.constant 0 : i32
    return %arg2, %c0_i32 : i32, i32
  }
  func.func @transform_4(%arg0: i32, %arg1: i32, %arg2: i32) -> (i32, i32) {
    %c0_i32 = arith.constant 0 : i32
    %c0_i32_0 = arith.constant 0 : i32
    return %c0_i32, %arg1 : i32, i32
  }
  func.func @transform_5(%arg0: i32, %arg1: i32, %arg2: i32) -> (i32, i32) {
    %c0_i32 = arith.constant 0 : i32
    return %arg0, %arg1 : i32, i32
  }
}

</mosaic_0001>

<llo_original>
// kernel: tpu_custom_call.1
$region0: #{tpu_custom_call.1}
  #allocation0 [shape = 'u32[]', space=smem, size = 0x4, offset = 0x4, fixed_abs, tag = 'smem constant byte address 0x4 - core index']
  #allocation1 [shape = 'u32[144,128]{1,0:T(1,128)}', space=vmem, size = 0x12000, scoped, tag = 'internal scratch']
  #allocation2 [shape = 'f32[16,128]{1,0:T(8,128)}', space=vmem, size = 0x2000, scoped, tag = 'scratch operand']
  #allocation3 [shape = 'f32[16,8]{1,0:T(8,128)}', space=vmem, size = 0x2000, scoped, tag = 'scratch operand']
  %s0 = inlined_call_operand.hbm [shape: bf16[16,32], index: 0, kind: input, shape index: {}]
  %s1 = inlined_call_operand.vmem [shape: bf16[32,128], index: 1, kind: input, shape index: {}]
  %s2 = inlined_call_operand.vmem [shape: bf16[1,128], index: 2, kind: input, shape index: {}]
  %s3 = inlined_call_operand.vmem [shape: bf16[32,8], index: 3, kind: input, shape index: {}]
  %s4 = inlined_call_operand.vmem [shape: bf16[8,128], index: 4, kind: input, shape index: {}]
  %s5 = inlined_call_operand.hbm [shape: bf16[16,128], index: 5, kind: output, shape index: {}]
  %s6 = sld [smem:[#allocation0]]
  $region50: #{tpu_custom_call.1} parent=0
    _
  %s8 = ssub.s32 1, %s6
  %s9 = scalar_select 0, %s8, %s6
  $region1: #{tpu_custom_call.1} parent=0
    #allocation4 [shape = 'u8[4096]{0}', space=vmem, size = 0x1000, scoped, tag = 'input window, operand 0, single buffered']
    #allocation5 [shape = 's32[1]{0}', space=sflag, size = 0x4, scoped, tag = 'scoped memory for tpu_custom_call.1']
    #allocation6 [shape = 's32[1]{0}', space=sflag, size = 0x4, scoped, tag = 'scoped memory for tpu_custom_call.1']
    #allocation7 [shape = 'u8[4096]{0}', space=vmem, size = 0x1000, scoped, tag = 'output window, operand 0, single buffered']
    %10 = vsyncpa [#allocation5], 0
    %11 = vsyncpa [#allocation6], 0
    // Predicated region
    $region2: #{tpu_custom_call.1} parent=1 // pred_check
      _
    $region3: #{tpu_custom_call.1} parent=1 // pred_check_branch
      %13 = sbr.rel (0) target = $region5
    $region4: #{tpu_custom_call.1} parent=1 // pred_region
      %s15 = ssub.s32 128, 128
      %16 = vsyncadd [#allocation5], %s15
      %s17 = sshll.u32 [#allocation4], 4
      %s18 = int_to_ptr.vmem [resolvable:$true] %s17
      %23 = dma.hbm_to_vmem [thread:$0]  %s0, 128, %s18, [#allocation5], 64, 64, 4
    $region5: #{tpu_custom_call.1} parent=1 // pred_fallthru
      _
    // Predicated region
    $region6: #{tpu_custom_call.1} parent=1 // pred_check
      _
    $region7: #{tpu_custom_call.1} parent=1 // pred_check_branch
      %25 = sbr.rel (0) target = $region9
    $region8: #{tpu_custom_call.1} parent=1 // pred_region
      _
    $region9: #{tpu_custom_call.1} parent=1 // pred_fallthru
      _
    // Predicated region
    $region10: #{tpu_custom_call.1} parent=1 // pred_check
      _
    $region11: #{tpu_custom_call.1} parent=1 // pred_check_branch
      %27 = sbr.rel (0) target = $region13
    $region12: #{tpu_custom_call.1} parent=1 // pred_region
      _
    $region13: #{tpu_custom_call.1} parent=1 // pred_fallthru
      _
    // Predicated region
    $region14: #{tpu_custom_call.1} parent=1 // pred_check
      _
    $region15: #{tpu_custom_call.1} parent=1 // pred_check_branch
      %29 = sbr.rel (0) target = $region17
    $region16: #{tpu_custom_call.1} parent=1 // pred_region
      _
    $region17: #{tpu_custom_call.1} parent=1 // pred_fallthru
      _
    // Predicated region
    $region18: #{tpu_custom_call.1} parent=1 // pred_check
      _
    $region19: #{tpu_custom_call.1} parent=1 // pred_check_branch
      %31 = sbr.rel (0) target = $region21
    $region20: #{tpu_custom_call.1} parent=1 // pred_region
      _
    $region21: #{tpu_custom_call.1} parent=1 // pred_fallthru
      _
    // Predicated region
    $region22: #{tpu_custom_call.1} parent=1 // pred_check
      _
    $region23: #{tpu_custom_call.1} parent=1 // pred_check_branch
      %33 = sbr.rel (0) target = $region25
    $region24: #{tpu_custom_call.1} parent=1 // pred_region
      %34 = dma.done [#allocation5], 128
    $region25: #{tpu_custom_call.1} parent=1 // pred_fallthru
      _
    %p36 = scmp.eq.s32.totalorder 0, 0
    // Predicated region
    $region26: #{tpu_custom_call.1} parent=1 // pred_check
      %p37 = pneg %p36
    $region27: #{tpu_custom_call.1} parent=1 // pred_check_branch
      %39 = sbr.rel (%p37) target = $region29
    $region28: #{tpu_custom_call.1} parent=1 // pred_region
      %40 = vst [vmem:[#allocation2] sm:$0xff] 0.0
      %41 = vst [vmem:[#allocation2 + $0x8] sm:$0xff] 0.0
    $region29: #{tpu_custom_call.1} parent=1 // pred_fallthru
      _
    %p42 = scmp.eq.s32.totalorder 0, 0
    %p43 = pnand %p42, %p36
    %p44 = pneg %p43
    // Predicated region
    $region30: #{tpu_custom_call.1} parent=1 // pred_check
      _
    $region31: #{tpu_custom_call.1} parent=1 // pred_check_branch
      %46 = sbr.rel (%p43) target = $region33
    $region32: #{tpu_custom_call.1} parent=1 // pred_region
      %vm47 = vcmask 64512
      %48 = vst.msk [vmem:[#allocation3] sm:$0xff] %vm47, 0.0
      %49 = vst.msk [vmem:[#allocation3 + $0x8] sm:$0xff] %vm47, 0.0
    $region33: #{tpu_custom_call.1} parent=1 // pred_fallthru
      _
    %v50 = vld [vmem:[#allocation4] sm:$0xf]
    %v51 = vld [vmem:[#allocation4 + $0x4] sm:$0xf]
    %v52 = vld [vmem:[#allocation2] sm:$0xff]
    %v53 = vld [vmem:[#allocation2 + $0x8] sm:$0xff]
    %v54 = vld [vmem:[%s1] sm:$0xf]
    %v55 = vld [vmem:[%s1 + $0x4] sm:$0xf]
    %v56 = vld [vmem:[%s1 + $0x8] sm:$0xf]
    %v57 = vld [vmem:[%s1 + $0xc] sm:$0xf]
    %v60 = vunpack.c.l.b16 %v50
    %v61 = vunpack.c.l.b16 %v51
    %v62 = vpack.c.b16 %v61, %v60
    %v67 = vunpack.c.l.b16 %v54
    %v68 = vunpack.c.l.b16 %v55
    %v69 = vunpack.c.l.b16 %v56
    %v70 = vunpack.c.l.b16 %v57
    %v71 = vpack.c.b16 %v68, %v67
    %v72 = vpack.c.b16 %v70, %v69
    %vm75 = vcmask 261120
    %v77 = vsel %vm75, %v62, 0
    %79 = vmatprep.subr.bf16.mxu0 0
    %80 = vmatpush1.bf16.msra.mxu0 0
    %81 = vmatprep.subr.bf16.mxu0 0
    %82 = vmatpush1.bf16.msra.mxu0 0
    %83 = vmatprep.subr.bf16.mxu0 0
    %84 = vmatpush1.bf16.msra.mxu0 0
    %85 = vmatprep.subr.bf16.mxu0 0
    %86 = vmatpush1.bf16.msra.mxu0 0
    %87 = vmatprep.subr.bf16.mxu0 0
    %88 = vmatpush1.bf16.msra.mxu0 0
    %89 = vmatprep.subr.bf16.mxu0 0
    %90 = vmatpush1.bf16.msra.mxu0 0
    %91 = vmatprep.subr.bf16.mxu0 0
    %92 = vmatpush1.bf16.msra.mxu0 %v72
    %93 = vmatprep.subr.bf16.mxu0 0
    %94 = vmatpush1.bf16.msra.mxu0 %v71
    %95 = vmatprep.subr.bf16.mxu0 0
    %96 = vmatpush2.bf16.msra.mxu0 0
    %97 = vmatprep.subr.bf16.mxu0 0
    %98 = vmatpush2.bf16.msra.mxu0 0
    %99 = vmatprep.subr.bf16.mxu0 0
    %100 = vmatpush2.bf16.msra.mxu0 0
    %101 = vmatprep.subr.bf16.mxu0 0
    %102 = vmatpush2.bf16.msra.mxu0 0
    %103 = vmatprep.subr.bf16.mxu0 0
    %104 = vmatpush2.bf16.msra.mxu0 0
    %105 = vmatprep.subr.bf16.mxu0 0
    %106 = vmatpush2.bf16.msra.mxu0 0
    %107 = vmatprep.subr.bf16.mxu0 0
    %108 = vmatpush2.bf16.msra.mxu0 0
    %109 = vmatprep.subr.bf16.mxu0 0
    %110 = vmatpush2.bf16.msra.mxu0 0
    %111 = vmatprep.mubr.bf16.mxu0 0
    %112 = vmatmul.mubr.bf16.gmra.mxu0 %v77
    %v113 = vpop.f32.mrf.mxu0
    %v114 = vadd.f32 0.0, %v113
    %v115 = vpop.f32.mrf.mxu0
    %v116 = vpop.f32.mrf.mxu0
    %v117 = vadd.f32 0.0, %v116
    %v118 = vpop.f32.mrf.mxu0
    %119 = vdwg.mxu0
    %v120 = vadd.f32 %v52, %v114
    %v121 = vadd.f32 %v53, %v117
    %122 = vst [vmem:[#allocation2] sm:$0xff] %v120
    %123 = vst [vmem:[#allocation2 + $0x8] sm:$0xff] %v121
    // Predicated region
    $region34: #{tpu_custom_call.1} parent=1 // pred_check
      %p124 = pneg %p42
    $region35: #{tpu_custom_call.1} parent=1 // pred_check_branch
      %126 = sbr.rel (%p124) target = $region37
    $region36: #{tpu_custom_call.1} parent=1 // pred_region
      %v127 = vld [vmem:[#allocation3] sm:$0xff]
      %v128 = vld [vmem:[#allocation3 + $0x8] sm:$0xff]
      %v129 = vld [vmem:[%s3] sm:$0xf]
      %v130 = vld [vmem:[%s3 + $0x4] sm:$0xf]
      %v131 = vld [vmem:[%s3 + $0x8] sm:$0xf]
      %v132 = vld [vmem:[%s3 + $0xc] sm:$0xf]
      %v137 = vunpack.c.l.b16 %v129
      %v138 = vunpack.c.l.b16 %v130
      %v139 = vunpack.c.l.b16 %v131
      %v140 = vunpack.c.l.b16 %v132
      %v141 = vpack.c.b16 %v138, %v137
      %v142 = vpack.c.b16 %v140, %v139
      %145 = vmatprep.subr.bf16.mxu0 0
      %146 = vmatpush1.bf16.msra.mxu0 0
      %147 = vmatprep.subr.bf16.mxu0 0
      %148 = vmatpush1.bf16.msra.mxu0 0
      %149 = vmatprep.subr.bf16.mxu0 0
      %150 = vmatpush1.bf16.msra.mxu0 0
      %151 = vmatprep.subr.bf16.mxu0 0
      %152 = vmatpush1.bf16.msra.mxu0 0
      %153 = vmatprep.subr.bf16.mxu0 0
      %154 = vmatpush1.bf16.msra.mxu0 0
      %155 = vmatprep.subr.bf16.mxu0 0
      %156 = vmatpush1.bf16.msra.mxu0 0
      %157 = vmatprep.subr.bf16.mxu0 0
      %158 = vmatpush1.bf16.msra.mxu0 %v142
      %159 = vmatprep.subr.bf16.mxu0 0
      %160 = vmatpush1.bf16.msra.mxu0 %v141
      %161 = vmatprep.subr.bf16.mxu0 0
      %162 = vmatpush2.bf16.msra.mxu0 0
      %163 = vmatprep.subr.bf16.mxu0 0
      %164 = vmatpush2.bf16.msra.mxu0 0
      %165 = vmatprep.subr.bf16.mxu0 0
      %166 = vmatpush2.bf16.msra.mxu0 0
      %167 = vmatprep.subr.bf16.mxu0 0
      %168 = vmatpush2.bf16.msra.mxu0 0
      %169 = vmatprep.subr.bf16.mxu0 0
      %170 = vmatpush2.bf16.msra.mxu0 0
      %171 = vmatprep.subr.bf16.mxu0 0
      %172 = vmatpush2.bf16.msra.mxu0 0
      %173 = vmatprep.subr.bf16.mxu0 0
      %174 = vmatpush2.bf16.msra.mxu0 0
      %175 = vmatprep.subr.bf16.mxu0 0
      %176 = vmatpush2.bf16.msra.mxu0 0
      %177 = vmatprep.mubr.bf16.mxu0 0
      %178 = vmatmul.mubr.bf16.gmra.mxu0 %v77
      %v179 = vpop.f32.mrf.mxu0
      %v180 = vadd.f32 0.0, %v179
      %v181 = vpop.f32.mrf.mxu0
      %v182 = vpop.f32.mrf.mxu0
      %v183 = vadd.f32 0.0, %v182
      %v184 = vpop.f32.mrf.mxu0
      %185 = vdwg.mxu0
      %v186 = vadd.f32 %v127, %v180
      %v187 = vadd.f32 %v128, %v183
      %vm188 = vcmask 64512
      %189 = vst.msk [vmem:[#allocation3] sm:$0xff] %vm188, %v186
      %190 = vst.msk [vmem:[#allocation3 + $0x8] sm:$0xff] %vm188, %v187
    $region37: #{tpu_custom_call.1} parent=1 // pred_fallthru
      _
    // Predicated region
    $region38: #{tpu_custom_call.1} parent=1 // pred_check
      %p191 = pneg %p36
    $region39: #{tpu_custom_call.1} parent=1 // pred_check_branch
      %193 = sbr.rel (%p191) target = $region41
    $region40: #{tpu_custom_call.1} parent=1 // pred_region
      %v194 = vld [vmem:[#allocation3] sm:$0xff]
      %v195 = vld [vmem:[#allocation3 + $0x8] sm:$0xff]
      %v196 = vpack.c.bf16 %v195, %v194
      %v197 = vld [vmem:[%s4] sm:$0xf]
      %vm198 = vcmask 64512
      %v200 = vsel %vm198, %v196, 0
      %vm202 = vcmask 1043456
      %v204 = vsel %vm202, %v197, 0
      %206 = vmatprep.subr.bf16.mxu0 0
      %207 = vmatpush1.bf16.msra.mxu0 0
      %208 = vmatprep.subr.bf16.mxu0 0
      %209 = vmatpush1.bf16.msra.mxu0 0
      %210 = vmatprep.subr.bf16.mxu0 0
      %211 = vmatpush1.bf16.msra.mxu0 0
      %212 = vmatprep.subr.bf16.mxu0 0
      %213 = vmatpush1.bf16.msra.mxu0 0
      %214 = vmatprep.subr.bf16.mxu0 0
      %215 = vmatpush1.bf16.msra.mxu0 0
      %216 = vmatprep.subr.bf16.mxu0 0
      %217 = vmatpush1.bf16.msra.mxu0 0
      %218 = vmatprep.subr.bf16.mxu0 0
      %219 = vmatpush1.bf16.msra.mxu0 0
      %220 = vmatprep.subr.bf16.mxu0 0
      %221 = vmatpush1.bf16.msra.mxu0 %v204
      %222 = vmatprep.subr.bf16.mxu0 0
      %223 = vmatpush2.bf16.msra.mxu0 0
      %224 = vmatprep.subr.bf16.mxu0 0
      %225 = vmatpush2.bf16.msra.mxu0 0
      %226 = vmatprep.subr.bf16.mxu0 0
      %227 = vmatpush2.bf16.msra.mxu0 0
      %228 = vmatprep.subr.bf16.mxu0 0
      %229 = vmatpush2.bf16.msra.mxu0 0
      %230 = vmatprep.subr.bf16.mxu0 0
      %231 = vmatpush2.bf16.msra.mxu0 0
      %232 = vmatprep.subr.bf16.mxu0 0
      %233 = vmatpush2.bf16.msra.mxu0 0
      %234 = vmatprep.subr.bf16.mxu0 0
      %235 = vmatpush2.bf16.msra.mxu0 0
      %236 = vmatprep.subr.bf16.mxu0 0
      %237 = vmatpush2.bf16.msra.mxu0 0
      %238 = vmatprep.mubr.bf16.mxu0 0
      %239 = vmatmul.mubr.bf16.gmra.mxu0 %v200
      %v240 = vpop.f32.mrf.mxu0
      %v241 = vadd.f32 0.0, %v240
      %v242 = vpop.f32.mrf.mxu0
      %v243 = vpop.f32.mrf.mxu0
      %v244 = vadd.f32 0.0, %v243
      %v245 = vpop.f32.mrf.mxu0
      %246 = vdwg.mxu0
      %v247 = vld [vmem:[#allocation2] sm:$0xff]
      %v248 = vld [vmem:[#allocation2 + $0x8] sm:$0xff]
      %v249 = vld [vmem:[%s2] sm:$0x1]
      %v250 = vunpack.c.l.bf16 %v249
      %v251 = vlaneseq
      %v252 = vshrl.u32 %v251, 7
      %v253 = vsub.s32 0, %v252
      %v254 = vrot.slane %v250, %v253
      %v255 = vadd.f32 %v247, %v254
      %v256 = vadd.f32 %v248, %v254
      %v257 = vadd.f32 %v255, %v241
      %v258 = vadd.f32 %v256, %v244
      %v259 = vpack.c.bf16 %v258, %v257
      %v261 = vunpack.c.l.b16 %v259
      %v262 = vunpack.c.h.b16 %v259
      %v263 = vpack.c.b16 %v261, %v261
      %v264 = vpack.c.b16 %v262, %v262
      %267 = vst [vmem:[#allocation7] sm:$0xf] %v263
      %268 = vst [vmem:[#allocation7 + $0x4] sm:$0xf] %v264
    $region41: #{tpu_custom_call.1} parent=1 // pred_fallthru
      _
    // Predicated region
    $region42: #{tpu_custom_call.1} parent=1 // pred_check
      _
    $region43: #{tpu_custom_call.1} parent=1 // pred_check_branch
      %270 = sbr.rel (0) target = $region45
    $region44: #{tpu_custom_call.1} parent=1 // pred_region
      %s272 = ssub.s32 128, 128
      %273 = vsyncadd [#allocation6], %s272
      %s274 = sshll.u32 [#allocation7], 4
      %s275 = int_to_ptr.vmem [resolvable:$true] %s274
      %280 = dma.vmem_to_hbm [thread:$0]  %s275, 128, %s5, [#allocation6], 64, 64, 4
    $region45: #{tpu_custom_call.1} parent=1 // pred_fallthru
      _
    // Predicated region
    $region46: #{tpu_custom_call.1} parent=1 // pred_check
      _
    $region47: #{tpu_custom_call.1} parent=1 // pred_check_branch
      %282 = sbr.rel (0) target = $region49
    $region48: #{tpu_custom_call.1} parent=1 // pred_region
      %283 = dma.done [#allocation6], 128
    $region49: #{tpu_custom_call.1} parent=1 // pred_fallthru
      _
    %284 = vsyncpa [#allocation5], 1
    %285 = vsyncpa [#allocation6], 1

</llo_original>
